<compile_context>
chip_gen: v5e
topology: v5e:2x2
jax: 0.10.0
libtpu: 0.0.40
codegen_flags: <defaults>
</compile_context>

<pallas_src>
import jax
import jax.numpy as jnp
from jax.experimental import pallas as pl
from jax.experimental.pallas import tpu as pltpu


def _cdiv(a, b):
    return (a + b - 1) // b


def _round_up(x, m):
    return _cdiv(x, m) * m


def _vmem_limit_bytes():
    """Scoped VMEM budget: ~3/4 of physical, capped at 96 MiB (=> ~48 MiB on v7x)."""
    try:
        cap = int(pltpu.get_tpu_info().vmem_capacity_bytes)
    except Exception:
        cap = 64 * 1024 * 1024          # conservative fallback (v7x physical size)
    return min((cap * 3) // 4, 96 * 1024 * 1024)


# ------------------------------- fused Pallas kernel --------------------------------
def _linear_model_kernel(a_ref, h_ref, wm_ref, wt_ref, b_ref, feat_ref, y_ref):
    # a_ref   : (TILE_N, N)      row tile of (g + mean-edge-weight)       (compute dtype)
    # h_ref   : (N, F)           node features, resident                  (compute dtype)
    # wm_ref  : (F, OUT)         stand-in model projection, resident      (compute dtype)
    # wt_ref  : (OUT, TARGET)    nn.Linear weight^T, resident             (compute dtype)
    # b_ref   : (1, TARGET)      nn.Linear bias, resident                 (f32)
    # feat_ref: (TILE_N, OUT)    self.feature                             (f32)
    # y_ref   : (TILE_N, TARGET) linear output                            (f32)
    agg = jnp.dot(a_ref[...], h_ref[...], preferred_element_type=jnp.float32)
    x = jnp.dot(agg.astype(wm_ref.dtype), wm_ref[...],
                preferred_element_type=jnp.float32)
    x = jnp.maximum(x, 0.0)                       # ReLU epilogue in f32 (v5e-safe)
    feat_ref[...] = x.astype(feat_ref.dtype)
    y = jnp.dot(x.astype(wt_ref.dtype), wt_ref[...],
                preferred_element_type=jnp.float32)
    y_ref[...] = (y + b_ref[...]).astype(y_ref.dtype)


def fused_linear_model(a, h, wm, wt, b, *, max_tile_n=1024):
    """feature = relu((a @ h) @ wm); y = feature @ wt + b  — one pallas_call."""
    n, k = a.shape
    k2, f = h.shape
    f2, out = wm.shape
    out2, target = wt.shape
    assert k == k2 and f == f2 and out == out2 and b.shape == (1, target)

    itemsize = jnp.dtype(a.dtype).itemsize
    sub = 16 if a.dtype == jnp.bfloat16 else 8        # bf16 min tile is (16, 128)

    # Row tiling derived from n (no blow-up padding for awkward n).
    n_pad0 = _round_up(n, sub)
    num_tiles = _cdiv(n_pad0, max_tile_n)
    tile_n = _round_up(_cdiv(n_pad0, num_tiles), sub)

    # Shrink tile_n if double-buffered row/output tiles + resident weights would
    # overflow the scoped VMEM budget.
    vmem_limit = _vmem_limit_bytes()
    resident = (k * f + f * out + out * target) * itemsize + target * 4
    per_row = 2 * k * itemsize + 2 * (out + target) * 4
    while tile_n > sub and resident + tile_n * per_row > (vmem_limit * 3) // 5:
        tile_n = max(sub, _round_up(tile_n // 2, sub))
    # TODO(synk): if the resident weights alone outgrow the scoped VMEM budget
    # (F/OUT >~ 2K in f32, sooner on v7x), split the contraction over an "arbitrary"
    # grid axis with an f32 accumulator scratch instead of keeping them fully resident.

    n_pad = _cdiv(n_pad0, tile_n) * tile_n
    if n_pad != n:
        a = jnp.pad(a, ((0, n_pad - n), (0, 0)))      # only the row (sublane) dim pads
    grid = (n_pad // tile_n,)

    cost = pl.CostEstimate(
        flops=2 * n_pad * (k * f + f * out + out * target),
        transcendentals=0,
        bytes_accessed=(n_pad * k + k * f + f * out + out * target) * itemsize
        + target * 4 + n_pad * (out + target) * 4)

    feat, y = pl.pallas_call(
        _linear_model_kernel,
        out_shape=(jax.ShapeDtypeStruct((n_pad, out), jnp.float32),
                   jax.ShapeDtypeStruct((n_pad, target), jnp.float32)),
        grid=grid,
        in_specs=[
            pl.BlockSpec((tile_n, k), lambda i: (i, 0)),       # row tiles of a
            pl.BlockSpec((k, f), lambda i: (0, 0)),            # resident h
            pl.BlockSpec((f, out), lambda i: (0, 0)),          # resident Wm
            pl.BlockSpec((out, target), lambda i: (0, 0)),     # resident Wt (pre-T'd)
            pl.BlockSpec((1, target), lambda i: (0, 0)),       # resident bias
        ],
        out_specs=(pl.BlockSpec((tile_n, out), lambda i: (i, 0)),
                   pl.BlockSpec((tile_n, target), lambda i: (i, 0))),
        compiler_params=pltpu.CompilerParams(
            dimension_semantics=("parallel",),     # shard row tiles across v7x's 2 TCs
            vmem_limit_bytes=vmem_limit),
        cost_estimate=cost,
    )(a, h, wm, wt, b)
    return feat[:n], y[:n]


# ---------------------------- one-time parameter packing ----------------------------
def pack_linear_model_params(w_model, w_lin, b_lin, compute_dtype=jnp.float32):
    """Cast / transpose parameters ONCE (no per-call w.T, no lane padding needed)."""
    wm = jnp.asarray(w_model, compute_dtype)                   # (F, OUT)
    wt = jnp.asarray(w_lin).T.astype(compute_dtype)            # (OUT, TARGET) = W^T
    b = jnp.asarray(b_lin, jnp.float32).reshape(1, -1)         # (1, TARGET)
    return wm, wt, b


# --------------------------------- LinearModel forward -------------------------------
# TODO(synk): `self.model` is an opaque submodule in the reference; a deterministic
# graph aggregation (g + e.mean(-1)) @ h followed by the in-kernel projection + ReLU
# stands in for it (the two matmuls + ReLU run inside the Pallas kernel).
@jax.jit
def linear_model_forward(g, h, e, wm, wt, b):
    a = (g + e.mean(axis=-1)).astype(wm.dtype)   # XLA fuses mean+add into one pass
    feat, y = fused_linear_model(a, h.astype(wm.dtype), wm, wt, b)
    return y, feat                               # y = self.linear(x), feat = self.feature


if __name__ == "__main__":
    # Small shapes implied by the forward: N nodes, F node-feat dim, FE edge-feat dim,
    # OUT = model output dim, TARGET = linear output dim.  N=50 exercises row padding.
    N, F, FE, OUT, TARGET = 50, 16, 4, 32, 24

    key = jax.random.PRNGKey(0)
    kg, kh, ke, km, kb = jax.random.split(key, 5)

    g = (jax.random.uniform(kg, (N, N)) > 0.5).astype(jnp.float32)
    h = jax.random.normal(kh, (N, F), dtype=jnp.float32)
    e = jax.random.normal(ke, (N, N, FE), dtype=jnp.float32)

    w_model = jax.random.normal(km, (F, OUT), dtype=jnp.float32) * 0.1
    # nn.Linear(OUT, TARGET) with torch.nn.init.eye_(weight):
    w_lin = jnp.eye(TARGET, OUT, dtype=jnp.float32)             # (target, out)
    bound = 1.0 / jnp.sqrt(jnp.float32(OUT))
    b_lin = jax.random.uniform(kb, (TARGET,), minval=-bound, maxval=bound,
                               dtype=jnp.float32)

    # Pure-JAX reference of the same forward.
    a_full = g + e.mean(axis=-1)
    agg_ref = a_full @ h
    feat_ref = jax.nn.relu(agg_ref @ w_model)
    y_ref = feat_ref @ w_lin.T + b_lin

    # f32 path (default; tight check, v5e-friendly).
    wm, wt, b = pack_linear_model_params(w_model, w_lin, b_lin, jnp.float32)
    y, feat = linear_model_forward(g, h, e, wm, wt, b)
    y = jax.block_until_ready(y)
    assert y.shape == (N, TARGET) and feat.shape == (N, OUT)
    assert jnp.allclose(feat, feat_ref, atol=1e-4, rtol=1e-4)
    assert jnp.allclose(y, y_ref, atol=1e-4, rtol=1e-4)

    # bf16 compute path (recommended on v6e/v7x: halves HBM read bytes, full-rate MXU;
    # f32 accumulation / epilogue; `feature` and `y` still returned in f32).
    wm16, wt16, b16 = pack_linear_model_params(w_model, w_lin, b_lin, jnp.bfloat16)
    y16, feat16 = linear_model_forward(g, h, e, wm16, wt16, b16)
    y16 = jax.block_until_ready(y16)
    # Mirror the kernel's bf16 rounding points for a tight bf16 reference.
    agg16 = jnp.dot(a_full.astype(jnp.bfloat16), h.astype(jnp.bfloat16),
                    preferred_element_type=jnp.float32)
    feat16_ref = jax.nn.relu(jnp.dot(agg16.astype(jnp.bfloat16), wm16,
                                     preferred_element_type=jnp.float32))
    y16_ref = jnp.dot(feat16_ref.astype(jnp.bfloat16), wt16,
                      preferred_element_type=jnp.float32) + b_lin
    assert jnp.allclose(y16, y16_ref, atol=5e-2, rtol=5e-2)
    assert jnp.allclose(y16, y_ref, atol=2e-1, rtol=2e-1)   # bf16-truncation vs f32 ref

    print("KERNEL_OK")
</pallas_src>

<mosaic_0001>
module attributes {stable_mosaic.version = 11 : i64} {
  func.func @_linear_model_kernel(%arg0: i32, %arg1: memref<56x50xf32, #tpu.memory_space<vmem>>, %arg2: memref<50x16xf32, #tpu.memory_space<vmem>>, %arg3: memref<16x32xf32, #tpu.memory_space<vmem>>, %arg4: memref<32x24xf32, #tpu.memory_space<vmem>>, %arg5: memref<1x24xf32, #tpu.memory_space<vmem>>, %arg6: memref<56x32xf32, #tpu.memory_space<vmem>>, %arg7: memref<56x24xf32, #tpu.memory_space<vmem>>) attributes {dimension_semantics = [#tpu.dimension_semantics<parallel>], iteration_bounds = array<i64: 1>, scalar_prefetch = 0 : i64, scratch_operands = 0 : i64, tpu.core_type = #tpu.core_type<tc>, window_params = [{transform_indices = @transform_0, window_bounds = array<i64: 56, 50>}, {pipeline_mode = #tpu.pipeline_mode<synchronous>, transform_indices = @transform_1, window_bounds = array<i64: 50, 16>}, {pipeline_mode = #tpu.pipeline_mode<synchronous>, transform_indices = @transform_2, window_bounds = array<i64: 16, 32>}, {pipeline_mode = #tpu.pipeline_mode<synchronous>, transform_indices = @transform_3, window_bounds = array<i64: 32, 24>}, {pipeline_mode = #tpu.pipeline_mode<synchronous>, transform_indices = @transform_4, window_bounds = array<i64: 1, 24>}, {transform_indices = @transform_5, window_bounds = array<i64: 56, 32>}, {transform_indices = @transform_6, window_bounds = array<i64: 56, 24>}]} {
    %c0 = arith.constant 0 : index
    %c0_0 = arith.constant 0 : index
    %0 = vector.load %arg1[%c0, %c0_0] : memref<56x50xf32, #tpu.memory_space<vmem>>, vector<56x50xf32>
    %c0_1 = arith.constant 0 : index
    %c0_2 = arith.constant 0 : index
    %1 = vector.load %arg2[%c0_1, %c0_2] : memref<50x16xf32, #tpu.memory_space<vmem>>, vector<50x16xf32>
    %cst = arith.constant dense<0.000000e+00> : vector<56x16xf32>
    %2 = tpu.matmul %0, %1, %cst {dimension_numbers = #tpu.dot_dimension_numbers<[1], [0], [0], [1], [0, 0, 1, 1], [], []>} : vector<56x50xf32>, vector<50x16xf32>, vector<56x16xf32> -> vector<56x16xf32>
    %c0_3 = arith.constant 0 : index
    %c0_4 = arith.constant 0 : index
    %3 = vector.load %arg3[%c0_3, %c0_4] : memref<16x32xf32, #tpu.memory_space<vmem>>, vector<16x32xf32>
    %cst_5 = arith.constant dense<0.000000e+00> : vector<56x32xf32>
    %4 = tpu.matmul %2, %3, %cst_5 {dimension_numbers = #tpu.dot_dimension_numbers<[1], [0], [0], [1], [0, 0, 1, 1], [], []>} : vector<56x16xf32>, vector<16x32xf32>, vector<56x32xf32> -> vector<56x32xf32>
    %cst_6 = arith.constant 0.000000e+00 : f32
    %5 = vector.broadcast %cst_6 : f32 to vector<56x32xf32>
    %6 = arith.maximumf %4, %5 : vector<56x32xf32>
    %c0_7 = arith.constant 0 : index
    %c0_8 = arith.constant 0 : index
    %7 = vector.load %arg6[%c0_7, %c0_8] : memref<56x32xf32, #tpu.memory_space<vmem>>, vector<56x32xf32>
    tpu.vector_store %arg6[%c0_7, %c0_8], %6 {strides = array<i32>} : memref<56x32xf32, #tpu.memory_space<vmem>>, vector<56x32xf32>,
    %c0_9 = arith.constant 0 : index
    %c0_10 = arith.constant 0 : index
    %8 = vector.load %arg4[%c0_9, %c0_10] : memref<32x24xf32, #tpu.memory_space<vmem>>, vector<32x24xf32>
    %cst_11 = arith.constant dense<0.000000e+00> : vector<56x24xf32>
    %9 = tpu.matmul %6, %8, %cst_11 {dimension_numbers = #tpu.dot_dimension_numbers<[1], [0], [0], [1], [0, 0, 1, 1], [], []>} : vector<56x32xf32>, vector<32x24xf32>, vector<56x24xf32> -> vector<56x24xf32>
    %c0_12 = arith.constant 0 : index
    %c0_13 = arith.constant 0 : index
    %10 = vector.load %arg5[%c0_12, %c0_13] : memref<1x24xf32, #tpu.memory_space<vmem>>, vector<1x24xf32>
    %11 = vector.broadcast %10 : vector<1x24xf32> to vector<56x24xf32>
    %12 = arith.addf %9, %11 : vector<56x24xf32>
    %c0_14 = arith.constant 0 : index
    %c0_15 = arith.constant 0 : index
    %13 = vector.load %arg7[%c0_14, %c0_15] : memref<56x24xf32, #tpu.memory_space<vmem>>, vector<56x24xf32>
    tpu.vector_store %arg7[%c0_14, %c0_15], %12 {strides = array<i32>} : memref<56x24xf32, #tpu.memory_space<vmem>>, vector<56x24xf32>,
    return
  }
  func.func @transform_0(%arg0: i32) -> (i32, i32) {
    %c0_i32 = arith.constant 0 : i32
    %c0_i32_0 = arith.constant 0 : i32
    return %arg0, %c0_i32 : i32, i32
  }
  func.func @transform_1(%arg0: i32) -> (i32, i32) {
    %c0_i32 = arith.constant 0 : i32
    %c0_i32_0 = arith.constant 0 : i32
    %c0_i32_1 = arith.constant 0 : i32
    return %c0_i32, %c0_i32_0 : i32, i32
  }
  func.func @transform_2(%arg0: i32) -> (i32, i32) {
    %c0_i32 = arith.constant 0 : i32
    %c0_i32_0 = arith.constant 0 : i32
    %c0_i32_1 = arith.constant 0 : i32
    return %c0_i32, %c0_i32_0 : i32, i32
  }
  func.func @transform_3(%arg0: i32) -> (i32, i32) {
    %c0_i32 = arith.constant 0 : i32
    %c0_i32_0 = arith.constant 0 : i32
    %c0_i32_1 = arith.constant 0 : i32
    return %c0_i32, %c0_i32_0 : i32, i32
  }
  func.func @transform_4(%arg0: i32) -> (i32, i32) {
    %c0_i32 = arith.constant 0 : i32
    %c0_i32_0 = arith.constant 0 : i32
    %c0_i32_1 = arith.constant 0 : i32
    return %c0_i32, %c0_i32_0 : i32, i32
  }
  func.func @transform_5(%arg0: i32) -> (i32, i32) {
    %c0_i32 = arith.constant 0 : i32
    %c0_i32_0 = arith.constant 0 : i32
    return %arg0, %c0_i32 : i32, i32
  }
  func.func @transform_6(%arg0: i32) -> (i32, i32) {
    %c0_i32 = arith.constant 0 : i32
    %c0_i32_0 = arith.constant 0 : i32
    return %arg0, %c0_i32 : i32, i32
  }
}

</mosaic_0001>

<llo_original>
// kernel: linear_model_forward.1
$region0: #{linear_model_forward.1}
  #allocation0 [shape = 'u32[]', space=smem, size = 0x4, offset = 0x4, fixed_abs, tag = 'smem constant byte address 0x4 - core index']
  #allocation1 [shape = 'u32[72,128]{1,0:T(1,128)}', space=vmem, size = 0x9000, scoped, tag = 'internal scratch']
  %s0 = inlined_call_operand.vmem [shape: f32[56,50], index: 0, kind: input, shape index: {}]
  %s1 = inlined_call_operand.vmem [shape: f32[50,16], index: 1, kind: input, shape index: {}]
  %s2 = inlined_call_operand.vmem [shape: f32[16,32], index: 2, kind: input, shape index: {}]
  %s3 = inlined_call_operand.vmem [shape: f32[32,24], index: 3, kind: input, shape index: {}]
  %s4 = inlined_call_operand.vmem [shape: f32[1,24], index: 4, kind: input, shape index: {}]
  %s5 = inlined_call_operand.vmem [shape: f32[56,32], index: 5, kind: output, shape index: {0}]
  %s6 = inlined_call_operand.vmem [shape: f32[56,24], index: 6, kind: output, shape index: {1}]
  %7 = xla_tuple %s5, %s6
  %s8 = sld [smem:[#allocation0]]
  $region38: #{linear_model_forward.1} parent=0
    _
  %s10 = ssub.s32 1, %s8
  %s11 = scalar_select 0, %s10, %s8
  // Predicated region
  $region2: #{linear_model_forward.1} parent=0 // pred_check
    _
  $region3: #{linear_model_forward.1} parent=0 // pred_check_branch
    %13 = sbr.rel (0) target = $region5
  $region4: #{linear_model_forward.1} parent=0 // pred_region
    _
  $region5: #{linear_model_forward.1} parent=0 // pred_fallthru
    _
  // Predicated region
  $region6: #{linear_model_forward.1} parent=0 // pred_check
    _
  $region7: #{linear_model_forward.1} parent=0 // pred_check_branch
    %15 = sbr.rel (0) target = $region9
  $region8: #{linear_model_forward.1} parent=0 // pred_region
    _
  $region9: #{linear_model_forward.1} parent=0 // pred_fallthru
    _
  // Predicated region
  $region10: #{linear_model_forward.1} parent=0 // pred_check
    _
  $region11: #{linear_model_forward.1} parent=0 // pred_check_branch
    %17 = sbr.rel (0) target = $region13
  $region12: #{linear_model_forward.1} parent=0 // pred_region
    _
  $region13: #{linear_model_forward.1} parent=0 // pred_fallthru
    _
  // Predicated region
  $region14: #{linear_model_forward.1} parent=0 // pred_check
    _
  $region15: #{linear_model_forward.1} parent=0 // pred_check_branch
    %19 = sbr.rel (0) target = $region17
  $region16: #{linear_model_forward.1} parent=0 // pred_region
    _
  $region17: #{linear_model_forward.1} parent=0 // pred_fallthru
    _
  // Predicated region
  $region18: #{linear_model_forward.1} parent=0 // pred_check
    _
  $region19: #{linear_model_forward.1} parent=0 // pred_check_branch
    %21 = sbr.rel (0) target = $region21
  $region20: #{linear_model_forward.1} parent=0 // pred_region
    _
  $region21: #{linear_model_forward.1} parent=0 // pred_fallthru
    _
  %v22 = vld [vmem:[%s0] sm:$0xff]
  %v23 = vld [vmem:[%s0 + $0x8] sm:$0xff]
  %v24 = vld [vmem:[%s0 + $0x10] sm:$0xff]
  %v25 = vld [vmem:[%s0 + $0x18] sm:$0xff]
  %v26 = vld [vmem:[%s0 + $0x20] sm:$0xff]
  %v27 = vld [vmem:[%s0 + $0x28] sm:$0xff]
  %v28 = vld [vmem:[%s0 + $0x30] sm:$0xff]
  %v29 = vld [vmem:[%s1] sm:$0xff]
  %v30 = vld [vmem:[%s1 + $0x8] sm:$0xff]
  %v31 = vld [vmem:[%s1 + $0x10] sm:$0xff]
  %v32 = vld [vmem:[%s1 + $0x18] sm:$0xff]
  %v33 = vld [vmem:[%s1 + $0x20] sm:$0xff]
  %v34 = vld [vmem:[%s1 + $0x28] sm:$0xff]
  %v35 = vld [vmem:[%s1 + $0x30] sm:$0x3]
  %vm36 = vcmask 408576
  %v38 = vsel %vm36, %v22, 0
  %v41 = vsel %vm36, %v23, 0
  %v44 = vsel %vm36, %v24, 0
  %v47 = vsel %vm36, %v25, 0
  %v50 = vsel %vm36, %v26, 0
  %v53 = vsel %vm36, %v27, 0
  %v56 = vsel %vm36, %v28, 0
  %vm58 = vcmask 1041408
  %v60 = vsel %vm58, %v35, 0
  %62 = vmatpush.msra.mxu0 0.0
  %63 = vmatpush.msra.mxu0 0.0
  %64 = vmatpush.msra.mxu0 0.0
  %65 = vmatpush.msra.mxu0 0.0
  %66 = vmatpush.msra.mxu0 0.0
  %67 = vmatpush.msra.mxu0 0.0
  %68 = vmatpush.msra.mxu0 0.0
  %69 = vmatpush.msra.mxu0 0.0
  %70 = vmatpush.msra.mxu0 0.0
  %71 = vmatpush.msra.mxu0 %v60
  %72 = vmatpush.msra.mxu0 %v34
  %73 = vmatpush.msra.mxu0 %v33
  %74 = vmatpush.msra.mxu0 %v32
  %75 = vmatpush.msra.mxu0 %v31
  %76 = vmatpush.msra.mxu0 %v30
  %77 = vmatpush.msra.mxu0 %v29
  %78 = vmatmul.f32.gmra.mxu0 %v38
  %v79 = vpop.f32.mrf.mxu0
  %v80 = vadd.f32 0.0, %v79
  %81 = vmatmul.f32.gmra.mxu0 %v41
  %v82 = vpop.f32.mrf.mxu0
  %v83 = vadd.f32 0.0, %v82
  %84 = vmatmul.f32.gmra.mxu0 %v44
  %v85 = vpop.f32.mrf.mxu0
  %v86 = vadd.f32 0.0, %v85
  %87 = vmatmul.f32.gmra.mxu0 %v47
  %v88 = vpop.f32.mrf.mxu0
  %v89 = vadd.f32 0.0, %v88
  %90 = vmatmul.f32.gmra.mxu0 %v50
  %v91 = vpop.f32.mrf.mxu0
  %v92 = vadd.f32 0.0, %v91
  %93 = vmatmul.f32.gmra.mxu0 %v53
  %v94 = vpop.f32.mrf.mxu0
  %v95 = vadd.f32 0.0, %v94
  %96 = vmatmul.f32.gmra.mxu0 %v56
  %v97 = vpop.f32.mrf.mxu0
  %v98 = vadd.f32 0.0, %v97
  %99 = vdwg.mxu0
  %v100 = vld [vmem:[%s2] sm:$0xff]
  %v101 = vld [vmem:[%s2 + $0x8] sm:$0xff]
  %vm102 = vcmask 130048
  %v104 = vsel %vm102, %v80, 0
  %v107 = vsel %vm102, %v83, 0
  %v110 = vsel %vm102, %v86, 0
  %v113 = vsel %vm102, %v89, 0
  %v116 = vsel %vm102, %v92, 0
  %v119 = vsel %vm102, %v95, 0
  %v122 = vsel %vm102, %v98, 0
  %124 = vmatpush.msra.mxu0 0.0
  %125 = vmatpush.msra.mxu0 0.0
  %126 = vmatpush.msra.mxu0 0.0
  %127 = vmatpush.msra.mxu0 0.0
  %128 = vmatpush.msra.mxu0 0.0
  %129 = vmatpush.msra.mxu0 0.0
  %130 = vmatpush.msra.mxu0 0.0
  %131 = vmatpush.msra.mxu0 0.0
  %132 = vmatpush.msra.mxu0 0.0
  %133 = vmatpush.msra.mxu0 0.0
  %134 = vmatpush.msra.mxu0 0.0
  %135 = vmatpush.msra.mxu0 0.0
  %136 = vmatpush.msra.mxu0 0.0
  %137 = vmatpush.msra.mxu0 0.0
  %138 = vmatpush.msra.mxu0 %v101
  %139 = vmatpush.msra.mxu0 %v100
  %140 = vmatmul.f32.gmra.mxu0 %v104
  %v141 = vpop.f32.mrf.mxu0
  %v142 = vadd.f32 0.0, %v141
  %143 = vmatmul.f32.gmra.mxu0 %v107
  %v144 = vpop.f32.mrf.mxu0
  %v145 = vadd.f32 0.0, %v144
  %146 = vmatmul.f32.gmra.mxu0 %v110
  %v147 = vpop.f32.mrf.mxu0
  %v148 = vadd.f32 0.0, %v147
  %149 = vmatmul.f32.gmra.mxu0 %v113
  %v150 = vpop.f32.mrf.mxu0
  %v151 = vadd.f32 0.0, %v150
  %152 = vmatmul.f32.gmra.mxu0 %v116
  %v153 = vpop.f32.mrf.mxu0
  %v154 = vadd.f32 0.0, %v153
  %155 = vmatmul.f32.gmra.mxu0 %v119
  %v156 = vpop.f32.mrf.mxu0
  %v157 = vadd.f32 0.0, %v156
  %158 = vmatmul.f32.gmra.mxu0 %v122
  %v159 = vpop.f32.mrf.mxu0
  %v160 = vadd.f32 0.0, %v159
  %161 = vdwg.mxu0
  %v162 = vmax.f32 %v142, 0.0
  %v163 = vmax.f32 %v145, 0.0
  %v164 = vmax.f32 %v148, 0.0
  %v165 = vmax.f32 %v151, 0.0
  %v166 = vmax.f32 %v154, 0.0
  %v167 = vmax.f32 %v157, 0.0
  %v168 = vmax.f32 %v160, 0.0
  %vm169 = vcmask 261120
  %170 = vst.msk [vmem:[%s5] sm:$0xff] %vm169, %v162
  %171 = vst.msk [vmem:[%s5 + $0x8] sm:$0xff] %vm169, %v163
  %172 = vst.msk [vmem:[%s5 + $0x10] sm:$0xff] %vm169, %v164
  %173 = vst.msk [vmem:[%s5 + $0x18] sm:$0xff] %vm169, %v165
  %174 = vst.msk [vmem:[%s5 + $0x20] sm:$0xff] %vm169, %v166
  %175 = vst.msk [vmem:[%s5 + $0x28] sm:$0xff] %vm169, %v167
  %176 = vst.msk [vmem:[%s5 + $0x30] sm:$0xff] %vm169, %v168
  %v177 = vld [vmem:[%s3] sm:$0xff]
  %v178 = vld [vmem:[%s3 + $0x8] sm:$0xff]
  %v179 = vld [vmem:[%s3 + $0x10] sm:$0xff]
  %v180 = vld [vmem:[%s3 + $0x18] sm:$0xff]
  %v181 = vld [vmem:[%s4] sm:$0x1]
  %v183 = vperm.slane %v181, 0
  %v186 = vsel %vm169, %v162, 0
  %v189 = vsel %vm169, %v163, 0
  %v192 = vsel %vm169, %v164, 0
  %v195 = vsel %vm169, %v165, 0
  %v198 = vsel %vm169, %v166, 0
  %v201 = vsel %vm169, %v167, 0
  %v204 = vsel %vm169, %v168, 0
  %206 = vmatpush.msra.mxu0 0.0
  %207 = vmatpush.msra.mxu0 0.0
  %208 = vmatpush.msra.mxu0 0.0
  %209 = vmatpush.msra.mxu0 0.0
  %210 = vmatpush.msra.mxu0 0.0
  %211 = vmatpush.msra.mxu0 0.0
  %212 = vmatpush.msra.mxu0 0.0
  %213 = vmatpush.msra.mxu0 0.0
  %214 = vmatpush.msra.mxu0 0.0
  %215 = vmatpush.msra.mxu0 0.0
  %216 = vmatpush.msra.mxu0 0.0
  %217 = vmatpush.msra.mxu0 0.0
  %218 = vmatpush.msra.mxu0 %v180
  %219 = vmatpush.msra.mxu0 %v179
  %220 = vmatpush.msra.mxu0 %v178
  %221 = vmatpush.msra.mxu0 %v177
  %222 = vmatmul.f32.gmra.mxu0 %v186
  %v223 = vpop.f32.mrf.mxu0
  %v224 = vadd.f32 %v183, %v223
  %225 = vmatmul.f32.gmra.mxu0 %v189
  %v226 = vpop.f32.mrf.mxu0
  %v227 = vadd.f32 %v183, %v226
  %228 = vmatmul.f32.gmra.mxu0 %v192
  %v229 = vpop.f32.mrf.mxu0
  %v230 = vadd.f32 %v183, %v229
  %231 = vmatmul.f32.gmra.mxu0 %v195
  %v232 = vpop.f32.mrf.mxu0
  %v233 = vadd.f32 %v183, %v232
  %234 = vmatmul.f32.gmra.mxu0 %v198
  %v235 = vpop.f32.mrf.mxu0
  %v236 = vadd.f32 %v183, %v235
  %237 = vmatmul.f32.gmra.mxu0 %v201
  %v238 = vpop.f32.mrf.mxu0
  %v239 = vadd.f32 %v183, %v238
  %240 = vmatmul.f32.gmra.mxu0 %v204
  %v241 = vpop.f32.mrf.mxu0
  %v242 = vadd.f32 %v183, %v241
  %243 = vdwg.mxu0
  %vm244 = vcmask 195584
  %245 = vst.msk [vmem:[%s6] sm:$0xff] %vm244, %v224
  %246 = vst.msk [vmem:[%s6 + $0x8] sm:$0xff] %vm244, %v227
  %247 = vst.msk [vmem:[%s6 + $0x10] sm:$0xff] %vm244, %v230
  %248 = vst.msk [vmem:[%s6 + $0x18] sm:$0xff] %vm244, %v233
  %249 = vst.msk [vmem:[%s6 + $0x20] sm:$0xff] %vm244, %v236
  %250 = vst.msk [vmem:[%s6 + $0x28] sm:$0xff] %vm244, %v239
  %251 = vst.msk [vmem:[%s6 + $0x30] sm:$0xff] %vm244, %v242
  // Predicated region
  $region22: #{linear_model_forward.1} parent=0 // pred_check
    _
  $region23: #{linear_model_forward.1} parent=0 // pred_check_branch
    %253 = sbr.rel (0) target = $region25
  $region24: #{linear_model_forward.1} parent=0 // pred_region
    _
  $region25: #{linear_model_forward.1} parent=0 // pred_fallthru
    _
  // Predicated region
  $region26: #{linear_model_forward.1} parent=0 // pred_check
    _
  $region27: #{linear_model_forward.1} parent=0 // pred_check_branch
    %255 = sbr.rel (0) target = $region29
  $region28: #{linear_model_forward.1} parent=0 // pred_region
    _
  $region29: #{linear_model_forward.1} parent=0 // pred_fallthru
    _
  // Predicated region
  $region30: #{linear_model_forward.1} parent=0 // pred_check
    _
  $region31: #{linear_model_forward.1} parent=0 // pred_check_branch
    %257 = sbr.rel (0) target = $region33
  $region32: #{linear_model_forward.1} parent=0 // pred_region
    _
  $region33: #{linear_model_forward.1} parent=0 // pred_fallthru
    _
  // Predicated region
  $region34: #{linear_model_forward.1} parent=0 // pred_check
    _
  $region35: #{linear_model_forward.1} parent=0 // pred_check_branch
    %259 = sbr.rel (0) target = $region37
  $region36: #{linear_model_forward.1} parent=0 // pred_region
    _
  $region37: #{linear_model_forward.1} parent=0 // pred_fallthru
    _

</llo_original>
